<compile_context>
chip_gen: v5e
topology: v5e:2x2
jax: 0.10.0
libtpu: 0.0.40
codegen_flags: <defaults>
</compile_context>

<pallas_src>
import functools

import jax
import jax.numpy as jnp
from jax.experimental import pallas as pl
from jax.experimental.pallas import tpu as pltpu


def _tanh_scale_kernel(w_ref, x_ref, o_ref):
    # w_ref: (1, tl) f32 per-column scale; x_ref / o_ref: (bn, tl).
    x = x_ref[...].astype(jnp.float32)
    o_ref[...] = (jnp.tanh(x) * w_ref[...]).astype(o_ref.dtype)


def _clamp_min_kernel(x_ref, o_ref, *, min_val):
    o_ref[...] = jnp.maximum(x_ref[...], min_val).astype(o_ref.dtype)


def _round_down(x, m):
    return (x // m) * m


def _choose_tiles(n_rows, n_cols, itemsize, target_block_bytes):
    """Pick (row_tile, col_tile) for a lane-dense (n_rows, n_cols) slab."""
    sub = max(8, 32 // itemsize)  # sublane unit: 8 f32 / 16 bf16 / 32 int8
    # Lane tile: full width if it fits, else the largest multiple of 128 that
    # divides n_cols and fits the budget at `sub` rows.
    tl = n_cols
    if n_cols % 128 == 0 and tl * sub * itemsize > target_block_bytes:
        tl = 128
        d = max(128, _round_down(target_block_bytes // (sub * itemsize), 128))
        while d >= 128:
            if n_cols % d == 0:
                tl = d
                break
            d -= 128
    # Row tile: as many rows as the budget allows, rounded to the sublane unit.
    row_budget = max(1, target_block_bytes // max(tl * itemsize, 1))
    if row_budget >= n_rows:
        bn = n_rows
    else:
        bn = min(n_rows, max(sub, _round_down(row_budget, sub)))
    # Prefer >=2 grid steps (pipeline overlap + megacore) when rows allow it.
    if bn == n_rows and tl == n_cols and n_rows >= 2 * sub:
        bn = max(sub, _round_down(n_rows // 2, sub))
    # Prefer a row tile that evenly divides n_rows (avoid a ragged last block),
    # without shrinking the tile below half its size.
    if bn < n_rows and bn % sub == 0:
        floor = max(sub, _round_down(bn // 2, sub))
        d = bn
        while d >= floor and n_rows % d != 0:
            d -= sub
        if d >= floor and n_rows % d == 0:
            bn = d
    return bn, tl


def nn_tail(y, rescale_weight, num_components, *,
            target_block_bytes=8 * 1024 * 1024,
            vmem_limit_bytes=40 * 1024 * 1024):
    """Fused Pallas epilogue of FlowPlusPlus `NN.forward`.

    Args:
      y: out_conv output, shape (N, (2 + 3*k) * C, H, W).
      rescale_weight: effective (weight-normalized) per-channel Rescale weight,
        shape (C,), (C, 1, 1) or anything reshapeable to (C,).
      num_components: k, number of mixture components.
    Returns:
      (s, t, pi, mu, scales) with the same shapes/dtypes as the PyTorch module.
    """
    N, D, H, W = y.shape
    k = int(num_components)
    M = 2 + 3 * k
    assert D % M == 0, f"channel dim {D} not divisible by 2 + 3k = {M}"
    C = D // M
    CHW = C * H * W
    itemsize = y.dtype.itemsize

    # Free (row-major) view: columns are (m, c, h, w) flattened.
    y_flat = y.reshape(N, M * CHW)

    # Pure slices (no compute) are left to XLA, which fuses them downstream.
    t = y_flat[:, 1 * CHW:2 * CHW].reshape(N, C, H, W)
    pi = y_flat[:, 2 * CHW:(2 + k) * CHW].reshape(N, k, C, H, W)
    mu = y_flat[:, (2 + k) * CHW:(2 + 2 * k) * CHW].reshape(N, k, C, H, W)

    w = rescale_weight.reshape(-1).astype(jnp.float32)
    assert w.shape[0] == C

    if CHW % 128 != 0:
        # TODO(synk): lane-sparse shapes (C*H*W not a multiple of 128) fall
        # back to XLA; a masked Pallas path is not worth it for a mem-bound op.
        s = (w.reshape(1, C, 1, 1)
             * jnp.tanh(y_flat[:, :CHW].reshape(N, C, H, W).astype(jnp.float32))
             ).astype(y.dtype)
        scales = jnp.maximum(
            y_flat[:, (2 + 2 * k) * CHW:].reshape(N, k, C, H, W), -7.0)
        return s, t, pi, mu, scales

    bn, tl = _choose_tiles(N, CHW, itemsize, target_block_bytes)
    cparams = pltpu.CompilerParams(
        dimension_semantics=("parallel", "parallel"),
        vmem_limit_bytes=vmem_limit_bytes,
    )

    # Lane-dense resident scale row: weight[c] repeated over (h, w), f32.
    w_row = jnp.repeat(w, H * W).reshape(1, CHW)

    # --- s = rescale_weight * tanh(x[:, 0]): fused tanh + per-channel scale,
    # reading the s-slab directly out of y (no intermediate slice copy). ---
    s = pl.pallas_call(
        _tanh_scale_kernel,
        out_shape=jax.ShapeDtypeStruct((N, CHW), y.dtype),
        grid_spec=pltpu.PrefetchScalarGridSpec(
            num_scalar_prefetch=0,
            grid=(pl.cdiv(N, bn), pl.cdiv(CHW, tl)),
            in_specs=[
                pl.BlockSpec((1, tl), lambda i, j: (0, j)),    # scale row
                pl.BlockSpec((bn, tl), lambda i, j: (i, j)),   # s-slab of y
            ],
            out_specs=pl.BlockSpec((bn, tl), lambda i, j: (i, j)),
        ),
        compiler_params=cparams,
        cost_estimate=pl.CostEstimate(
            flops=N * CHW, transcendentals=N * CHW,
            bytes_accessed=2 * N * CHW * itemsize + CHW * 4),
    )(w_row, y_flat).reshape(N, C, H, W)

    # --- scales = clamp(x[:, 2+2k:], min=-7): fused single-pass clamp,
    # reading its slab via a column-block offset into y. ---
    off_blocks = ((2 + 2 * k) * CHW) // tl      # exact: tl divides CHW
    scales = pl.pallas_call(
        functools.partial(_clamp_min_kernel, min_val=-7.0),
        out_shape=jax.ShapeDtypeStruct((N, k * CHW), y.dtype),
        grid_spec=pltpu.PrefetchScalarGridSpec(
            num_scalar_prefetch=0,
            grid=(pl.cdiv(N, bn), pl.cdiv(k * CHW, tl)),
            in_specs=[
                pl.BlockSpec((bn, tl),
                             lambda i, j, off=off_blocks: (i, off + j)),
            ],
            out_specs=pl.BlockSpec((bn, tl), lambda i, j: (i, j)),
        ),
        compiler_params=cparams,
        cost_estimate=pl.CostEstimate(
            flops=N * k * CHW, transcendentals=0,
            bytes_accessed=2 * N * k * CHW * itemsize),
    )(y_flat).reshape(N, k, C, H, W)

    return s, t, pi, mu, scales


def _reference_tail(y, rescale_weight, k):
    N, D, H, W = y.shape
    M = 2 + 3 * k
    C = D // M
    x5 = y.reshape(N, M, C, H, W)
    w = rescale_weight.reshape(1, C, 1, 1).astype(jnp.float32)
    s = (w * jnp.tanh(x5[:, 0].astype(jnp.float32))).astype(y.dtype)
    t = x5[:, 1]
    pi = x5[:, 2:2 + k]
    mu = x5[:, 2 + k:2 + 2 * k]
    scales = jnp.maximum(x5[:, 2 + 2 * k:], -7.0)
    return s, t, pi, mu, scales


if __name__ == "__main__":
    key = jax.random.PRNGKey(0)
    k1, k2, k3, k4 = jax.random.split(key, 4)

    # --- Primary test: batch=2, C=4, spatial=16, k=2 mixture components ->
    # out_conv output channels = (2 + 3k) * C = 32. ---
    N, C, H, W, K = 2, 4, 16, 16, 2
    D = (2 + 3 * K) * C
    y = jax.random.normal(k1, (N, D, H, W), dtype=jnp.float32)
    weight = jnp.ones((C, 1, 1), jnp.float32) + 0.1 * jax.random.normal(
        k2, (C, 1, 1), dtype=jnp.float32)

    outs = jax.block_until_ready(nn_tail(y, weight, K))
    refs = _reference_tail(y, weight, K)
    for o, r in zip(outs, refs):
        assert o.shape == r.shape and o.dtype == r.dtype
        assert jnp.allclose(o, r, atol=1e-5, rtol=1e-5)

    # --- Secondary test: force a multi-tile 2D grid including a ragged last
    # row block (N=10 -> 8 + 2 rows) by shrinking the per-block budget. ---
    N2, C2, K2 = 10, 4, 1
    D2 = (2 + 3 * K2) * C2
    y2 = jax.random.normal(k3, (N2, D2, H, W), dtype=jnp.float32)
    weight2 = jnp.ones((C2, 1, 1), jnp.float32) + 0.1 * jax.random.normal(
        k4, (C2, 1, 1), dtype=jnp.float32)
    outs2 = jax.block_until_ready(
        nn_tail(y2, weight2, K2, target_block_bytes=8 * 1024))
    refs2 = _reference_tail(y2, weight2, K2)
    for o, r in zip(outs2, refs2):
        assert o.shape == r.shape and o.dtype == r.dtype
        assert jnp.allclose(o, r, atol=1e-5, rtol=1e-5)

    print("KERNEL_OK")
</pallas_src>

<mosaic_0001>
module attributes {stable_mosaic.version = 11 : i64} {
  func.func @_tanh_scale_kernel(%arg0: i32, %arg1: i32, %arg2: memref<1x1024xf32, #tpu.memory_space<vmem>>, %arg3: memref<2x1024xf32, #tpu.memory_space<vmem>>, %arg4: memref<2x1024xf32, #tpu.memory_space<vmem>>) attributes {dimension_semantics = [#tpu.dimension_semantics<parallel>, #tpu.dimension_semantics<parallel>], iteration_bounds = array<i64: 1, 1>, scalar_prefetch = 0 : i64, scratch_operands = 0 : i64, tpu.core_type = #tpu.core_type<tc>, window_params = [{transform_indices = @transform_0, window_bounds = array<i64: 1, 1024>}, {transform_indices = @transform_1, window_bounds = array<i64: 2, 1024>}, {transform_indices = @transform_2, window_bounds = array<i64: 2, 1024>}]} {
    %c0 = arith.constant 0 : index
    %c0_0 = arith.constant 0 : index
    %0 = vector.load %arg3[%c0, %c0_0] : memref<2x1024xf32, #tpu.memory_space<vmem>>, vector<2x1024xf32>
    %1 = math.tanh %0 : vector<2x1024xf32>
    %c0_1 = arith.constant 0 : index
    %c0_2 = arith.constant 0 : index
    %2 = vector.load %arg2[%c0_1, %c0_2] : memref<1x1024xf32, #tpu.memory_space<vmem>>, vector<1x1024xf32>
    %3 = vector.broadcast %2 : vector<1x1024xf32> to vector<2x1024xf32>
    %4 = arith.mulf %1, %3 : vector<2x1024xf32>
    %c0_3 = arith.constant 0 : index
    %c0_4 = arith.constant 0 : index
    %5 = vector.load %arg4[%c0_3, %c0_4] : memref<2x1024xf32, #tpu.memory_space<vmem>>, vector<2x1024xf32>
    tpu.vector_store %arg4[%c0_3, %c0_4], %4 {strides = array<i32>} : memref<2x1024xf32, #tpu.memory_space<vmem>>, vector<2x1024xf32>,
    return
  }
  func.func @transform_0(%arg0: i32, %arg1: i32) -> (i32, i32) {
    %c0_i32 = arith.constant 0 : i32
    %c0_i32_0 = arith.constant 0 : i32
    return %c0_i32, %arg1 : i32, i32
  }
  func.func @transform_1(%arg0: i32, %arg1: i32) -> (i32, i32) {
    %c0_i32 = arith.constant 0 : i32
    return %arg0, %arg1 : i32, i32
  }
  func.func @transform_2(%arg0: i32, %arg1: i32) -> (i32, i32) {
    %c0_i32 = arith.constant 0 : i32
    return %arg0, %arg1 : i32, i32
  }
}

</mosaic_0001>

<llo_original>
// kernel: tpu_custom_call.1
$region0: #{tpu_custom_call.1}
  #allocation0 [shape = 'u32[]', space=smem, size = 0x4, offset = 0x4, fixed_abs, tag = 'smem constant byte address 0x4 - core index']
  #allocation1 [shape = 'u32[72,128]{1,0:T(1,128)}', space=vmem, size = 0x9000, scoped, tag = 'internal scratch']
  %s0 = inlined_call_operand.hbm [shape: f32[1,1024], index: 0, kind: input, shape index: {}]
  %s1 = inlined_call_operand.hbm [shape: f32[2,8192], index: 1, kind: input, shape index: {}]
  %s2 = inlined_call_operand.hbm [shape: f32[2,1024], index: 2, kind: output, shape index: {}]
  %s3 = sld [smem:[#allocation0]]
  $region26: #{tpu_custom_call.1} parent=0
    _
  %s5 = ssub.s32 1, %s3
  %s6 = scalar_select 0, %s5, %s3
  $region1: #{tpu_custom_call.1} parent=0
    #allocation2 [shape = 'u8[4096]{0}', space=vmem, size = 0x1000, scoped, tag = 'input window, operand 0, single buffered']
    #allocation3 [shape = 's32[1]{0}', space=sflag, size = 0x4, scoped, tag = 'scoped memory for tpu_custom_call.1']
    #allocation4 [shape = 's32[1]{0}', space=sflag, size = 0x4, scoped, tag = 'scoped memory for tpu_custom_call.1']
    #allocation5 [shape = 'u8[8192]{0}', space=vmem, size = 0x2000, scoped, tag = 'input window, operand 1, single buffered']
    #allocation6 [shape = 's32[1]{0}', space=sflag, size = 0x4, scoped, tag = 'scoped memory for tpu_custom_call.1']
    #allocation7 [shape = 'u8[8192]{0}', space=vmem, size = 0x2000, scoped, tag = 'output window, operand 0, single buffered']
    %7 = vsyncpa [#allocation3], 0
    %8 = vsyncpa [#allocation6], 0
    %9 = vsyncpa [#allocation4], 0
    // Predicated region
    $region2: #{tpu_custom_call.1} parent=1 // pred_check
      _
    $region3: #{tpu_custom_call.1} parent=1 // pred_check_branch
      %11 = sbr.rel (0) target = $region5
    $region4: #{tpu_custom_call.1} parent=1 // pred_region
      %13 = vsyncadd [#allocation3], 0
      %s15 = sshll.u32 %s0, 4
      %s16 = int_to_ptr.hbm [resolvable:$true] %s15
      %s17 = sshll.u32 [#allocation2], 4
      %s18 = int_to_ptr.vmem [resolvable:$true] %s17
      %20 = dma.hbm_to_vmem [thread:$0]  %s16, 128, %s18, [#allocation3]
    $region5: #{tpu_custom_call.1} parent=1 // pred_fallthru
      _
    // Predicated region
    $region6: #{tpu_custom_call.1} parent=1 // pred_check
      _
    $region7: #{tpu_custom_call.1} parent=1 // pred_check_branch
      %22 = sbr.rel (0) target = $region9
    $region8: #{tpu_custom_call.1} parent=1 // pred_region
      %24 = vsyncadd [#allocation6], 0
      %s26 = sshll.u32 %s1, 4
      %s27 = int_to_ptr.hbm [resolvable:$true] %s26
      %s28 = sshll.u32 [#allocation5], 4
      %s29 = int_to_ptr.vmem [resolvable:$true] %s28
      %31 = dma.hbm_to_vmem [thread:$0]  %s27, 256, %s29, [#allocation6]
    $region9: #{tpu_custom_call.1} parent=1 // pred_fallthru
      _
    // Predicated region
    $region10: #{tpu_custom_call.1} parent=1 // pred_check
      _
    $region11: #{tpu_custom_call.1} parent=1 // pred_check_branch
      %33 = sbr.rel (0) target = $region13
    $region12: #{tpu_custom_call.1} parent=1 // pred_region
      %35 = dma.done [#allocation3], 128
    $region13: #{tpu_custom_call.1} parent=1 // pred_fallthru
      _
    // Predicated region
    $region14: #{tpu_custom_call.1} parent=1 // pred_check
      _
    $region15: #{tpu_custom_call.1} parent=1 // pred_check_branch
      %37 = sbr.rel (0) target = $region17
    $region16: #{tpu_custom_call.1} parent=1 // pred_region
      %39 = dma.done [#allocation6], 256
    $region17: #{tpu_custom_call.1} parent=1 // pred_fallthru
      _
    %v40 = vld [vmem:[#allocation5] sm:$0xff]
    %v41 = vld [vmem:[#allocation5 + $0x8] sm:$0xff]
    %v42 = vtanh.pop %v40
    %v43 = vtanh.pop %v41
    %v44 = vld [vmem:[#allocation2] sm:$0xff]
    %v46 = vperm.slane %v44, 0
    %v47 = vperm.slane %v44, 1
    %v48 = vperm.slane %v44, 2
    %v49 = vperm.slane %v44, 3
    %v50 = vperm.slane %v44, 4
    %v51 = vperm.slane %v44, 5
    %v52 = vperm.slane %v44, 6
    %v53 = vperm.slane %v44, 7
    %v54 = vrot.slane %v47, 6
    %v55 = vrot.slane %v48, 4
    %v56 = vrot.slane %v49, 2
    %v57 = vrot.slane %v51, 6
    %v58 = vrot.slane %v52, 4
    %v59 = vrot.slane %v53, 2
    %vm60 = vcmask 1041408
    %v61 = vsel %vm60, %v46, %v54
    %vm62 = vcmask 1045508
    %v63 = vsel %vm62, %v55, %v56
    %vm64 = vcmask 1043456
    %v65 = vsel %vm64, %v61, %v63
    %v66 = vsel %vm60, %v50, %v57
    %v67 = vsel %vm62, %v58, %v59
    %v68 = vsel %vm64, %v66, %v67
    %v71 = vmul.f32 %v42, %v65
    %v72 = vmul.f32 %v43, %v68
    %73 = vst [vmem:[#allocation7] sm:$0xff] %v71
    %74 = vst [vmem:[#allocation7 + $0x8] sm:$0xff] %v72
    // Predicated region
    $region18: #{tpu_custom_call.1} parent=1 // pred_check
      _
    $region19: #{tpu_custom_call.1} parent=1 // pred_check_branch
      %76 = sbr.rel (0) target = $region21
    $region20: #{tpu_custom_call.1} parent=1 // pred_region
      %78 = vsyncadd [#allocation4], 0
      %s80 = sshll.u32 [#allocation7], 4
      %s81 = int_to_ptr.vmem [resolvable:$true] %s80
      %s82 = sshll.u32 %s2, 4
      %s83 = int_to_ptr.hbm [resolvable:$true] %s82
      %85 = dma.vmem_to_hbm [thread:$0]  %s81, 256, %s83, [#allocation4]
    $region21: #{tpu_custom_call.1} parent=1 // pred_fallthru
      _
    // Predicated region
    $region22: #{tpu_custom_call.1} parent=1 // pred_check
      _
    $region23: #{tpu_custom_call.1} parent=1 // pred_check_branch
      %87 = sbr.rel (0) target = $region25
    $region24: #{tpu_custom_call.1} parent=1 // pred_region
      %89 = dma.done [#allocation4], 256
    $region25: #{tpu_custom_call.1} parent=1 // pred_fallthru
      _
    %90 = vsyncpa [#allocation3], 1
    %91 = vsyncpa [#allocation6], 1
    %92 = vsyncpa [#allocation4], 1

</llo_original>
